<compile_context>
chip_gen: v7x
topology: tpu7x:2x2x1
jax: 0.10.0
libtpu: 0.0.40
codegen_flags: <defaults>
</compile_context>

<pallas_src>
from functools import partial

import jax
import jax.numpy as jnp
import numpy as np
from jax.experimental import pallas as pl
from jax.experimental.pallas import tpu as pltpu

_NEG_BIAS = -1e30  # f32 bias for padded action columns -> exp underflows to 0


def _round_up(x, m):
    return (x + m - 1) // m * m


def actor_mlp_kernel(x_ref, w1_ref, b1_ref, w2_ref, b2_ref, w3_ref, b3_ref,
                     out_ref, *, compute_dtype):
    """Fused 3-layer MLP + softmax on one (TB, D) batch tile.

    x:  (TB, D)    w1: (D, H1p)   b1: (1, H1p)
                   w2: (H1p, H2p) b2: (1, H2p)
                   w3: (H2p, Ap)  b3: (1, Ap)   (padded cols biased to -1e30)
    out: (TB, Ap) row-wise softmax probabilities (padded cols ~0).
    """
    x = x_ref[...].astype(compute_dtype)

    # fc1 + ReLU   (MXU accumulates in f32; bias/ReLU in f32)
    h1 = jnp.dot(x, w1_ref[...], preferred_element_type=jnp.float32)
    h1 = jnp.maximum(h1 + b1_ref[...], 0.0)

    # fc2 + ReLU
    h2 = jnp.dot(h1.astype(compute_dtype), w2_ref[...],
                 preferred_element_type=jnp.float32)
    h2 = jnp.maximum(h2 + b2_ref[...], 0.0)

    # fc3 (logits); padded action columns pick up the -1e30 bias
    logits = jnp.dot(h2.astype(compute_dtype), w3_ref[...],
                     preferred_element_type=jnp.float32)
    logits = logits + b3_ref[...]

    # Numerically stable softmax over the lane-dense last dim.
    # Exact divide (not approx reciprocal) so probs sum to 1 for PPO log-probs.
    m = jnp.max(logits, axis=-1, keepdims=True)
    e = jnp.exp(logits - m)
    denom = jnp.sum(e, axis=-1, keepdims=True)
    out_ref[...] = (e / denom).astype(out_ref.dtype)


def prepare_actor_params(params, *, compute_dtype=jnp.bfloat16):
    """Pad + cast parameters ONCE (reuse across all rollout forward calls).

    Weights are zero-padded to lane-dense (multiple-of-128) output dims and
    cast to `compute_dtype`; biases stay f32 (so the -1e30 pad sentinel does
    not saturate in bf16).
    """
    w1, b1, w2, b2, w3, b3 = params
    D, H1 = w1.shape
    H2 = w2.shape[1]
    A = w3.shape[1]
    H1p, H2p, Ap = _round_up(H1, 128), _round_up(H2, 128), _round_up(A, 128)

    w1p = jnp.zeros((D, H1p), compute_dtype).at[:, :H1].set(
        w1.astype(compute_dtype))
    b1p = jnp.zeros((1, H1p), jnp.float32).at[:, :H1].set(
        b1.reshape(1, H1).astype(jnp.float32))

    w2p = jnp.zeros((H1p, H2p), compute_dtype).at[:H1, :H2].set(
        w2.astype(compute_dtype))
    b2p = jnp.zeros((1, H2p), jnp.float32).at[:, :H2].set(
        b2.reshape(1, H2).astype(jnp.float32))

    w3p = jnp.zeros((H2p, Ap), compute_dtype).at[:H2, :A].set(
        w3.astype(compute_dtype))
    # Padded action columns get a huge negative f32 bias -> softmax prob ~ 0.
    b3p = jnp.full((1, Ap), _NEG_BIAS, jnp.float32).at[:, :A].set(
        b3.reshape(1, A).astype(jnp.float32))

    return (w1p, b1p, w2p, b2p, w3p, b3p), A


def actor_forward(state, padded_params, n_actions, *, tile_b=512):
    """ActorNetwork forward pass. Returns categorical probabilities (B, A)."""
    w1p, b1p, w2p, b2p, w3p, b3p = padded_params
    compute_dtype = w1p.dtype
    B, D = state.shape
    H1p, H2p, Ap = w1p.shape[1], w2p.shape[1], w3p.shape[1]

    # Small batches run as a single grid step; large batches tile at `tile_b`.
    tile_b_eff = min(tile_b, _round_up(B, 8))
    num_tiles = pl.cdiv(B, tile_b_eff)
    # Only megacore-split the batch when there are enough tiles to amortize the
    # duplicated weight DMA on v7x's two TensorCores.
    dim_sem = ("parallel",) if num_tiles > 2 else ("arbitrary",)

    # Cost estimate (helps XLA schedule this call inside a jitted PPO step).
    flops = 2 * B * (D * H1p + H1p * H2p + H2p * Ap)
    transcendentals = B * Ap  # exp
    param_bytes = sum(int(np.prod(a.shape)) * a.dtype.itemsize
                      for a in (w1p, b1p, w2p, b2p, w3p, b3p))
    bytes_accessed = (B * D * state.dtype.itemsize  # x stream
                      + param_bytes                 # resident params
                      + B * Ap * 4)                 # output writeback

    kernel = partial(actor_mlp_kernel, compute_dtype=compute_dtype)

    out_padded = pl.pallas_call(
        kernel,
        out_shape=jax.ShapeDtypeStruct((B, Ap), jnp.float32),
        grid=(num_tiles,),
        in_specs=[
            pl.BlockSpec((tile_b_eff, D), lambda i: (i, 0)),  # x tile (pipelined)
            pl.BlockSpec((D, H1p), lambda i: (0, 0)),         # weights: VMEM-resident
            pl.BlockSpec((1, H1p), lambda i: (0, 0)),
            pl.BlockSpec((H1p, H2p), lambda i: (0, 0)),
            pl.BlockSpec((1, H2p), lambda i: (0, 0)),
            pl.BlockSpec((H2p, Ap), lambda i: (0, 0)),
            pl.BlockSpec((1, Ap), lambda i: (0, 0)),
        ],
        out_specs=pl.BlockSpec((tile_b_eff, Ap), lambda i: (i, 0)),  # lane-dense
        compiler_params=pltpu.CompilerParams(dimension_semantics=dim_sem),
        cost_estimate=pl.CostEstimate(
            flops=int(flops),
            transcendentals=int(transcendentals),
            bytes_accessed=int(bytes_accessed)),
    )(state, w1p, b1p, w2p, b2p, w3p, b3p)

    # Slice the padded action columns back off (batch was never padded).
    return out_padded[:, :n_actions]


def init_linear(key, fan_in, fan_out):
    """Deterministic init mimicking torch.nn.Linear default (uniform +/- 1/sqrt(fan_in))."""
    kw, kb = jax.random.split(key)
    bound = 1.0 / np.sqrt(fan_in)
    w = jax.random.uniform(kw, (fan_in, fan_out), jnp.float32, -bound, bound)
    b = jax.random.uniform(kb, (1, fan_out), jnp.float32, -bound, bound)
    return w, b


if __name__ == "__main__":
    # Module-consistent shapes: input_dims=(8,), fc1=fc2=256 (module defaults),
    # n_actions=4.  Batch=200 is not a multiple of the tile size, so it also
    # exercises the partial-edge-block path; batch=5 exercises the tiny-batch
    # single-step path.
    input_dim = 8
    fc1_dims = 256
    fc2_dims = 256
    n_actions = 4

    key = jax.random.PRNGKey(0)
    k_x, k1, k2, k3 = jax.random.split(key, 4)

    w1, b1 = init_linear(k1, input_dim, fc1_dims)
    w2, b2 = init_linear(k2, fc1_dims, fc2_dims)
    w3, b3 = init_linear(k3, fc2_dims, n_actions)
    params = (w1, b1, w2, b2, w3, b3)

    # Pure-JAX reference.
    def ref(x):
        h = jnp.maximum(x @ w1 + b1, 0.0)
        h = jnp.maximum(h @ w2 + b2, 0.0)
        return jax.nn.softmax(h @ w3 + b3, axis=-1)

    # Padded parameters prepared ONCE and reused across forward calls.
    padded_bf16, A = prepare_actor_params(params, compute_dtype=jnp.bfloat16)
    padded_f32, _ = prepare_actor_params(params, compute_dtype=jnp.float32)

    for batch in (200, 5):
        state = jax.random.normal(k_x, (batch, input_dim), jnp.float32)
        expected = np.asarray(ref(state))

        # f32 MXU-operand path (reference precision).
        probs_f32 = jax.block_until_ready(
            actor_forward(state, padded_f32, A, tile_b=512))
        assert probs_f32.shape == (batch, n_actions)
        assert np.allclose(np.asarray(probs_f32), expected, atol=1e-4)
        assert np.allclose(np.asarray(probs_f32).sum(-1), 1.0, atol=1e-5)

        # bf16 MXU-operand path (default; f32 accumulation, looser tol).
        probs_bf16 = jax.block_until_ready(
            actor_forward(state, padded_bf16, A, tile_b=512))
        assert probs_bf16.shape == (batch, n_actions)
        assert np.allclose(np.asarray(probs_bf16), expected, atol=2e-2)
        assert np.allclose(np.asarray(probs_bf16).sum(-1), 1.0, atol=1e-3)

    print("KERNEL_OK")
</pallas_src>

<mosaic_0001>
module attributes {stable_mosaic.version = 11 : i64} {
  func.func @actor_mlp_kernel(%arg0: i32, %arg1: memref<200x8xf32, #tpu.memory_space<vmem>>, %arg2: memref<8x256xf32, #tpu.memory_space<vmem>>, %arg3: memref<1x256xf32, #tpu.memory_space<vmem>>, %arg4: memref<256x256xf32, #tpu.memory_space<vmem>>, %arg5: memref<1x256xf32, #tpu.memory_space<vmem>>, %arg6: memref<256x128xf32, #tpu.memory_space<vmem>>, %arg7: memref<1x128xf32, #tpu.memory_space<vmem>>, %arg8: memref<200x128xf32, #tpu.memory_space<vmem>>) attributes {dimension_semantics = [#tpu.dimension_semantics<arbitrary>], iteration_bounds = array<i64: 1>, scalar_prefetch = 0 : i64, scratch_operands = 0 : i64, tpu.core_type = #tpu.core_type<tc>, window_params = [{transform_indices = @transform_0, window_bounds = array<i64: 200, 8>}, {pipeline_mode = #tpu.pipeline_mode<synchronous>, transform_indices = @transform_1, window_bounds = array<i64: 8, 256>}, {pipeline_mode = #tpu.pipeline_mode<synchronous>, transform_indices = @transform_2, window_bounds = array<i64: 1, 256>}, {pipeline_mode = #tpu.pipeline_mode<synchronous>, transform_indices = @transform_3, window_bounds = array<i64: 256, 256>}, {pipeline_mode = #tpu.pipeline_mode<synchronous>, transform_indices = @transform_4, window_bounds = array<i64: 1, 256>}, {pipeline_mode = #tpu.pipeline_mode<synchronous>, transform_indices = @transform_5, window_bounds = array<i64: 256, 128>}, {pipeline_mode = #tpu.pipeline_mode<synchronous>, transform_indices = @transform_6, window_bounds = array<i64: 1, 128>}, {transform_indices = @transform_7, window_bounds = array<i64: 200, 128>}]} {
    %c0 = arith.constant 0 : index
    %c0_0 = arith.constant 0 : index
    %0 = vector.load %arg1[%c0, %c0_0] : memref<200x8xf32, #tpu.memory_space<vmem>>, vector<200x8xf32>
    %c0_1 = arith.constant 0 : index
    %c0_2 = arith.constant 0 : index
    %1 = vector.load %arg2[%c0_1, %c0_2] : memref<8x256xf32, #tpu.memory_space<vmem>>, vector<8x256xf32>
    %cst = arith.constant dense<0.000000e+00> : vector<200x256xf32>
    %2 = tpu.matmul %0, %1, %cst {dimension_numbers = #tpu.dot_dimension_numbers<[1], [0], [0], [1], [0, 0, 1, 1], [], []>} : vector<200x8xf32>, vector<8x256xf32>, vector<200x256xf32> -> vector<200x256xf32>
    %c0_3 = arith.constant 0 : index
    %c0_4 = arith.constant 0 : index
    %3 = vector.load %arg3[%c0_3, %c0_4] : memref<1x256xf32, #tpu.memory_space<vmem>>, vector<1x256xf32>
    %4 = vector.broadcast %3 : vector<1x256xf32> to vector<200x256xf32>
    %5 = arith.addf %2, %4 : vector<200x256xf32>
    %cst_5 = arith.constant 0.000000e+00 : f32
    %6 = vector.broadcast %cst_5 : f32 to vector<200x256xf32>
    %7 = arith.maximumf %5, %6 : vector<200x256xf32>
    %c0_6 = arith.constant 0 : index
    %c0_7 = arith.constant 0 : index
    %8 = vector.load %arg4[%c0_6, %c0_7] : memref<256x256xf32, #tpu.memory_space<vmem>>, vector<256x256xf32>
    %cst_8 = arith.constant dense<0.000000e+00> : vector<200x256xf32>
    %9 = tpu.matmul %7, %8, %cst_8 {dimension_numbers = #tpu.dot_dimension_numbers<[1], [0], [0], [1], [0, 0, 1, 1], [], []>} : vector<200x256xf32>, vector<256x256xf32>, vector<200x256xf32> -> vector<200x256xf32>
    %c0_9 = arith.constant 0 : index
    %c0_10 = arith.constant 0 : index
    %10 = vector.load %arg5[%c0_9, %c0_10] : memref<1x256xf32, #tpu.memory_space<vmem>>, vector<1x256xf32>
    %11 = vector.broadcast %10 : vector<1x256xf32> to vector<200x256xf32>
    %12 = arith.addf %9, %11 : vector<200x256xf32>
    %cst_11 = arith.constant 0.000000e+00 : f32
    %13 = vector.broadcast %cst_11 : f32 to vector<200x256xf32>
    %14 = arith.maximumf %12, %13 : vector<200x256xf32>
    %c0_12 = arith.constant 0 : index
    %c0_13 = arith.constant 0 : index
    %15 = vector.load %arg6[%c0_12, %c0_13] : memref<256x128xf32, #tpu.memory_space<vmem>>, vector<256x128xf32>
    %cst_14 = arith.constant dense<0.000000e+00> : vector<200x128xf32>
    %16 = tpu.matmul %14, %15, %cst_14 {dimension_numbers = #tpu.dot_dimension_numbers<[1], [0], [0], [1], [0, 0, 1, 1], [], []>} : vector<200x256xf32>, vector<256x128xf32>, vector<200x128xf32> -> vector<200x128xf32>
    %c0_15 = arith.constant 0 : index
    %c0_16 = arith.constant 0 : index
    %17 = vector.load %arg7[%c0_15, %c0_16] : memref<1x128xf32, #tpu.memory_space<vmem>>, vector<1x128xf32>
    %18 = vector.broadcast %17 : vector<1x128xf32> to vector<200x128xf32>
    %19 = arith.addf %16, %18 : vector<200x128xf32>
    %cst_17 = arith.constant dense<0xFF800000> : vector<200xf32>
    %20 = vector.multi_reduction <maximumf>, %19, %cst_17 [1] : vector<200x128xf32> to vector<200xf32>
    %21 = vector.shape_cast %20 : vector<200xf32> to vector<200x1xf32>
    %22 = vector.broadcast %21 : vector<200x1xf32> to vector<200x128xf32>
    %23 = arith.subf %19, %22 : vector<200x128xf32>
    %24 = math.exp %23 : vector<200x128xf32>
    %cst_18 = arith.constant dense<0.000000e+00> : vector<200xf32>
    %25 = vector.multi_reduction <add>, %24, %cst_18 [1] : vector<200x128xf32> to vector<200xf32>
    %26 = vector.shape_cast %25 : vector<200xf32> to vector<200x1xf32>
    %27 = vector.broadcast %26 : vector<200x1xf32> to vector<200x128xf32>
    %28 = arith.divf %24, %27 : vector<200x128xf32>
    %c0_19 = arith.constant 0 : index
    %c0_20 = arith.constant 0 : index
    %29 = vector.load %arg8[%c0_19, %c0_20] : memref<200x128xf32, #tpu.memory_space<vmem>>, vector<200x128xf32>
    tpu.vector_store %arg8[%c0_19, %c0_20], %28 {strides = array<i32>} : memref<200x128xf32, #tpu.memory_space<vmem>>, vector<200x128xf32>,
    return
  }
  func.func @transform_0(%arg0: i32) -> (i32, i32) {
    %c0_i32 = arith.constant 0 : i32
    %c0_i32_0 = arith.constant 0 : i32
    return %arg0, %c0_i32 : i32, i32
  }
  func.func @transform_1(%arg0: i32) -> (i32, i32) {
    %c0_i32 = arith.constant 0 : i32
    %c0_i32_0 = arith.constant 0 : i32
    %c0_i32_1 = arith.constant 0 : i32
    return %c0_i32, %c0_i32_0 : i32, i32
  }
  func.func @transform_2(%arg0: i32) -> (i32, i32) {
    %c0_i32 = arith.constant 0 : i32
    %c0_i32_0 = arith.constant 0 : i32
    %c0_i32_1 = arith.constant 0 : i32
    return %c0_i32, %c0_i32_0 : i32, i32
  }
  func.func @transform_3(%arg0: i32) -> (i32, i32) {
    %c0_i32 = arith.constant 0 : i32
    %c0_i32_0 = arith.constant 0 : i32
    %c0_i32_1 = arith.constant 0 : i32
    return %c0_i32, %c0_i32_0 : i32, i32
  }
  func.func @transform_4(%arg0: i32) -> (i32, i32) {
    %c0_i32 = arith.constant 0 : i32
    %c0_i32_0 = arith.constant 0 : i32
    %c0_i32_1 = arith.constant 0 : i32
    return %c0_i32, %c0_i32_0 : i32, i32
  }
  func.func @transform_5(%arg0: i32) -> (i32, i32) {
    %c0_i32 = arith.constant 0 : i32
    %c0_i32_0 = arith.constant 0 : i32
    %c0_i32_1 = arith.constant 0 : i32
    return %c0_i32, %c0_i32_0 : i32, i32
  }
  func.func @transform_6(%arg0: i32) -> (i32, i32) {
    %c0_i32 = arith.constant 0 : i32
    %c0_i32_0 = arith.constant 0 : i32
    %c0_i32_1 = arith.constant 0 : i32
    return %c0_i32, %c0_i32_0 : i32, i32
  }
  func.func @transform_7(%arg0: i32) -> (i32, i32) {
    %c0_i32 = arith.constant 0 : i32
    %c0_i32_0 = arith.constant 0 : i32
    return %arg0, %c0_i32 : i32, i32
  }
}

</mosaic_0001>

<llo_original>
// kernel: tpu_custom_call.1
$region0: #{tpu_custom_call.1}
  #allocation0 [shape = 'u32[]', space=smem, size = 0x4, offset = 0x4, fixed_abs, tag = 'smem constant byte address 0x4 - core index']
  #allocation1 [shape = 'u32[144,128]{1,0:T(1,128)}', space=vmem, size = 0x12000, scoped, tag = 'internal scratch']
  %s0 = inlined_call_operand.vmem [shape: f32[200,8], index: 0, kind: input, shape index: {}]
  %s1 = inlined_call_operand.vmem [shape: f32[8,256], index: 1, kind: input, shape index: {}]
  %s2 = inlined_call_operand.vmem [shape: f32[1,256], index: 2, kind: input, shape index: {}]
  %s3 = inlined_call_operand.hbm [shape: f32[256,256], index: 3, kind: input, shape index: {}]
  %s4 = inlined_call_operand.vmem [shape: f32[1,256], index: 4, kind: input, shape index: {}]
  %s5 = inlined_call_operand.hbm [shape: f32[256,128], index: 5, kind: input, shape index: {}]
  %s6 = inlined_call_operand.vmem [shape: f32[1,128], index: 6, kind: input, shape index: {}]
  %s7 = inlined_call_operand.hbm [shape: f32[200,128], index: 7, kind: output, shape index: {}]
  %s8 = sld [smem:[#allocation0]]
  $region46: #{tpu_custom_call.1} parent=0
    _
  %s10 = ssub.s32 1, %s8
  %s11 = scalar_select 0, %s10, %s8
  $region1: #{tpu_custom_call.1} parent=0
    #allocation2 [shape = 'u8[262144]{0}', space=vmem, size = 0x40000, scoped, tag = 'input window, operand 3, single buffered']
    #allocation3 [shape = 's32[1]{0}', space=sflag, size = 0x4, scoped, tag = 'scoped memory for tpu_custom_call.1']
    #allocation4 [shape = 's32[1]{0}', space=sflag, size = 0x4, scoped, tag = 'scoped memory for tpu_custom_call.1']
    #allocation5 [shape = 'u8[131072]{0}', space=vmem, size = 0x20000, scoped, tag = 'input window, operand 5, single buffered']
    #allocation6 [shape = 's32[1]{0}', space=sflag, size = 0x4, scoped, tag = 'scoped memory for tpu_custom_call.1']
    #allocation7 [shape = 'u8[102400]{0}', space=vmem, size = 0x19000, scoped, tag = 'output window, operand 0, single buffered']
    %12 = vsyncpa [#allocation3], 0
    %13 = vsyncpa [#allocation6], 0
    %14 = vsyncpa [#allocation4], 0
    // Predicated region
    $region2: #{tpu_custom_call.1} parent=1 // pred_check
      _
    $region3: #{tpu_custom_call.1} parent=1 // pred_check_branch
      %16 = sbr.rel (0) target = $region5
    $region4: #{tpu_custom_call.1} parent=1 // pred_region
      _
    $region5: #{tpu_custom_call.1} parent=1 // pred_fallthru
      _
    // Predicated region
    $region6: #{tpu_custom_call.1} parent=1 // pred_check
      _
    $region7: #{tpu_custom_call.1} parent=1 // pred_check_branch
      %18 = sbr.rel (0) target = $region9
    $region8: #{tpu_custom_call.1} parent=1 // pred_region
      _
    $region9: #{tpu_custom_call.1} parent=1 // pred_fallthru
      _
    // Predicated region
    $region10: #{tpu_custom_call.1} parent=1 // pred_check
      _
    $region11: #{tpu_custom_call.1} parent=1 // pred_check_branch
      %20 = sbr.rel (0) target = $region13
    $region12: #{tpu_custom_call.1} parent=1 // pred_region
      _
    $region13: #{tpu_custom_call.1} parent=1 // pred_fallthru
      _
    // Predicated region
    $region14: #{tpu_custom_call.1} parent=1 // pred_check
      _
    $region15: #{tpu_custom_call.1} parent=1 // pred_check_branch
      %22 = sbr.rel (0) target = $region17
    $region16: #{tpu_custom_call.1} parent=1 // pred_region
      %s24 = ssub.s32 8192, 8192
      %25 = vsyncadd [#allocation3], %s24
      %s26 = sshll.u32 [#allocation2], 4
      %s27 = int_to_ptr.vmem [resolvable:$true] %s26
      %32 = dma.hbm_to_vmem [thread:$0]  %s3, 8192, %s27, [#allocation3], 256, 256, 16
    $region17: #{tpu_custom_call.1} parent=1 // pred_fallthru
      _
    // Predicated region
    $region18: #{tpu_custom_call.1} parent=1 // pred_check
      _
    $region19: #{tpu_custom_call.1} parent=1 // pred_check_branch
      %34 = sbr.rel (0) target = $region21
    $region20: #{tpu_custom_call.1} parent=1 // pred_region
      _
    $region21: #{tpu_custom_call.1} parent=1 // pred_fallthru
      _
    // Predicated region
    $region22: #{tpu_custom_call.1} parent=1 // pred_check
      _
    $region23: #{tpu_custom_call.1} parent=1 // pred_check_branch
      %36 = sbr.rel (0) target = $region25
    $region24: #{tpu_custom_call.1} parent=1 // pred_region
      %s38 = ssub.s32 4096, 4096
      %39 = vsyncadd [#allocation6], %s38
      %s40 = sshll.u32 [#allocation5], 4
      %s41 = int_to_ptr.vmem [resolvable:$true] %s40
      %46 = dma.hbm_to_vmem [thread:$0]  %s5, 4096, %s41, [#allocation6], 128, 128, 8
    $region25: #{tpu_custom_call.1} parent=1 // pred_fallthru
      _
    // Predicated region
    $region26: #{tpu_custom_call.1} parent=1 // pred_check
      _
    $region27: #{tpu_custom_call.1} parent=1 // pred_check_branch
      %48 = sbr.rel (0) target = $region29
    $region28: #{tpu_custom_call.1} parent=1 // pred_region
      _
    $region29: #{tpu_custom_call.1} parent=1 // pred_fallthru
      _
    // Predicated region
    $region30: #{tpu_custom_call.1} parent=1 // pred_check
      _
    $region31: #{tpu_custom_call.1} parent=1 // pred_check_branch
      %50 = sbr.rel (0) target = $region33
    $region32: #{tpu_custom_call.1} parent=1 // pred_region
      %51 = dma.done [#allocation3], 8192
    $region33: #{tpu_custom_call.1} parent=1 // pred_fallthru
      _
    // Predicated region
    $region34: #{tpu_custom_call.1} parent=1 // pred_check
      _
    $region35: #{tpu_custom_call.1} parent=1 // pred_check_branch
      %53 = sbr.rel (0) target = $region37
    $region36: #{tpu_custom_call.1} parent=1 // pred_region
      %54 = dma.done [#allocation6], 4096
    $region37: #{tpu_custom_call.1} parent=1 // pred_fallthru
      _
    %v55 = vld [vmem:[%s0] sm:$0xff]
    %v56 = vld [vmem:[%s0 + $0x8] sm:$0xff]
    %v57 = vld [vmem:[%s0 + $0x10] sm:$0xff]
    %v58 = vld [vmem:[%s0 + $0x18] sm:$0xff]
    %v59 = vld [vmem:[%s0 + $0x20] sm:$0xff]
    %v60 = vld [vmem:[%s0 + $0x28] sm:$0xff]
    %v61 = vld [vmem:[%s0 + $0x30] sm:$0xff]
    %v62 = vld [vmem:[%s0 + $0x38] sm:$0xff]
    %v63 = vld [vmem:[%s0 + $0x40] sm:$0xff]
    %v64 = vld [vmem:[%s0 + $0x48] sm:$0xff]
    %v65 = vld [vmem:[%s0 + $0x50] sm:$0xff]
    %v66 = vld [vmem:[%s0 + $0x58] sm:$0xff]
    %v67 = vld [vmem:[%s0 + $0x60] sm:$0xff]
    %v68 = vld [vmem:[%s0 + $0x68] sm:$0xff]
    %v69 = vld [vmem:[%s0 + $0x70] sm:$0xff]
    %v70 = vld [vmem:[%s0 + $0x78] sm:$0xff]
    %v71 = vld [vmem:[%s0 + $0x80] sm:$0xff]
    %v72 = vld [vmem:[%s0 + $0x88] sm:$0xff]
    %v73 = vld [vmem:[%s0 + $0x90] sm:$0xff]
    %v74 = vld [vmem:[%s0 + $0x98] sm:$0xff]
    %v75 = vld [vmem:[%s0 + $0xa0] sm:$0xff]
    %v76 = vld [vmem:[%s0 + $0xa8] sm:$0xff]
    %v77 = vld [vmem:[%s0 + $0xb0] sm:$0xff]
    %v78 = vld [vmem:[%s0 + $0xb8] sm:$0xff]
    %v79 = vld [vmem:[%s0 + $0xc0] sm:$0xff]
    %v80 = vld [vmem:[%s1] sm:$0xff]
    %v81 = vld [vmem:[%s1 + $0x8] sm:$0xff]
    %v82 = vld [vmem:[%s2] sm:$0x3]
    %v84 = vlaneseq
    %v85 = vshrl.u32 %v84, 7
    %v86 = vsub.s32 0, %v85
    %v87 = vrot.slane %v82, %v86
    %v88 = vlaneseq
    %v89 = vshrl.u32 %v88, 7
    %v90 = vsub.s32 1, %v89
    %v91 = vrot.slane %v82, %v90
    %vm94 = vcmask 64512
    %v96 = vsel %vm94, %v55, 0
    %v99 = vsel %vm94, %v56, 0
    %v102 = vsel %vm94, %v57, 0
    %v105 = vsel %vm94, %v58, 0
    %v108 = vsel %vm94, %v59, 0
    %v111 = vsel %vm94, %v60, 0
    %v114 = vsel %vm94, %v61, 0
    %v117 = vsel %vm94, %v62, 0
    %v120 = vsel %vm94, %v63, 0
    %v123 = vsel %vm94, %v64, 0
    %v126 = vsel %vm94, %v65, 0
    %v129 = vsel %vm94, %v66, 0
    %v132 = vsel %vm94, %v67, 0
    %v135 = vsel %vm94, %v68, 0
    %v138 = vsel %vm94, %v69, 0
    %v141 = vsel %vm94, %v70, 0
    %v144 = vsel %vm94, %v71, 0
    %v147 = vsel %vm94, %v72, 0
    %v150 = vsel %vm94, %v73, 0
    %v153 = vsel %vm94, %v74, 0
    %v156 = vsel %vm94, %v75, 0
    %v159 = vsel %vm94, %v76, 0
    %v162 = vsel %vm94, %v77, 0
    %v165 = vsel %vm94, %v78, 0
    %v168 = vsel %vm94, %v79, 0
    %170 = vmatprep.subr.mxu0 %v81
    %171 = vmatpush1.msra.mxu0 %v80
    %172 = vmatprep.subr.mxu0 0.0
    %173 = vmatpush1.msra.mxu0 0.0
    %174 = vmatprep.subr.mxu0 0.0
    %175 = vmatpush1.msra.mxu0 0.0
    %176 = vmatprep.subr.mxu0 0.0
    %177 = vmatpush1.msra.mxu0 0.0
    %178 = vmatprep.subr.mxu0 0.0
    %179 = vmatpush1.msra.mxu0 0.0
    %180 = vmatprep.subr.mxu0 0.0
    %181 = vmatpush1.msra.mxu0 0.0
    %182 = vmatprep.subr.mxu0 0.0
    %183 = vmatpush1.msra.mxu0 0.0
    %184 = vmatprep.subr.mxu0 0.0
    %185 = vmatpush1.msra.mxu0 0.0
    %186 = vmatprep.subr.mxu0 0.0
    %187 = vmatpush1.msra.mxu0 0.0
    %188 = vmatprep.subr.mxu0 0.0
    %189 = vmatpush1.msra.mxu0 0.0
    %190 = vmatprep.subr.mxu0 0.0
    %191 = vmatpush1.msra.mxu0 0.0
    %192 = vmatprep.subr.mxu0 0.0
    %193 = vmatpush1.msra.mxu0 0.0
    %194 = vmatprep.subr.mxu0 0.0
    %195 = vmatpush1.msra.mxu0 0.0
    %196 = vmatprep.subr.mxu0 0.0
    %197 = vmatpush1.msra.mxu0 0.0
    %198 = vmatprep.subr.mxu0 0.0
    %199 = vmatpush1.msra.mxu0 0.0
    %200 = vmatprep.subr.mxu0 0.0
    %201 = vmatpush1.msra.mxu0 0.0
    %202 = vmatprep.subr.mxu0 0.0
    %203 = vmatpush1.msra.mxu0 0.0
    %204 = vmatprep.subr.mxu0 0.0
    %205 = vmatpush1.msra.mxu0 0.0
    %206 = vmatprep.subr.mxu0 0.0
    %207 = vmatpush1.msra.mxu0 0.0
    %208 = vmatprep.subr.mxu0 0.0
    %209 = vmatpush1.msra.mxu0 0.0
    %210 = vmatprep.subr.mxu0 0.0
    %211 = vmatpush1.msra.mxu0 0.0
    %212 = vmatprep.subr.mxu0 0.0
    %213 = vmatpush1.msra.mxu0 0.0
    %214 = vmatprep.subr.mxu0 0.0
    %215 = vmatpush1.msra.mxu0 0.0
    %216 = vmatprep.subr.mxu0 0.0
    %217 = vmatpush1.msra.mxu0 0.0
    %218 = vmatprep.subr.mxu0 0.0
    %219 = vmatpush1.msra.mxu0 0.0
    %220 = vmatprep.subr.mxu0 0.0
    %221 = vmatpush1.msra.mxu0 0.0
    %222 = vmatprep.subr.mxu0 0.0
    %223 = vmatpush1.msra.mxu0 0.0
    %224 = vmatprep.subr.mxu0 0.0
    %225 = vmatpush1.msra.mxu0 0.0
    %226 = vmatprep.subr.mxu0 0.0
    %227 = vmatpush1.msra.mxu0 0.0
    %228 = vmatprep.subr.mxu0 0.0
    %229 = vmatpush1.msra.mxu0 0.0
    %230 = vmatprep.subr.mxu0 0.0
    %231 = vmatpush1.msra.mxu0 0.0
    %232 = vmatprep.subr.mxu0 0.0
    %233 = vmatpush1.msra.mxu0 0.0
    %234 = vmatprep.mubr.f32.mxu0 0.0
    %235 = vmatmul.mubr.f32.gmra.mrb[0].mxu0 %v96
    %v236 = vpop.f32.mrb[0].mxu0
    %v237 = vadd.f32 %v87, %v236
    %v238 = vpop.f32.mrb[0].mxu0
    %v239 = vadd.f32 %v91, %v238
    %240 = vmatprep.mubr.f32.mxu0 0.0
    %241 = vmatmul.mubr.f32.gmra.mrb[0].mxu0 %v99
    %v242 = vpop.f32.mrb[0].mxu0
    %v243 = vadd.f32 %v87, %v242
    %v244 = vpop.f32.mrb[0].mxu0
    %v245 = vadd.f32 %v91, %v244
    %246 = vmatprep.mubr.f32.mxu0 0.0
    %247 = vmatmul.mubr.f32.gmra.mrb[0].mxu0 %v102
    %v248 = vpop.f32.mrb[0].mxu0
    %v249 = vadd.f32 %v87, %v248
    %v250 = vpop.f32.mrb[0].mxu0
    %v251 = vadd.f32 %v91, %v250
    %252 = vmatprep.mubr.f32.mxu0 0.0
    %253 = vmatmul.mubr.f32.gmra.mrb[0].mxu0 %v105
    %v254 = vpop.f32.mrb[0].mxu0
    %v255 = vadd.f32 %v87, %v254
    %v256 = vpop.f32.mrb[0].mxu0
    %v257 = vadd.f32 %v91, %v256
    %258 = vmatprep.mubr.f32.mxu0 0.0
    %259 = vmatmul.mubr.f32.gmra.mrb[0].mxu0 %v108
    %v260 = vpop.f32.mrb[0].mxu0
    %v261 = vadd.f32 %v87, %v260
    %v262 = vpop.f32.mrb[0].mxu0
    %v263 = vadd.f32 %v91, %v262
    %264 = vmatprep.mubr.f32.mxu0 0.0
    %265 = vmatmul.mubr.f32.gmra.mrb[0].mxu0 %v111
    %v266 = vpop.f32.mrb[0].mxu0
    %v267 = vadd.f32 %v87, %v266
    %v268 = vpop.f32.mrb[0].mxu0
    %v269 = vadd.f32 %v91, %v268
    %270 = vmatprep.mubr.f32.mxu0 0.0
    %271 = vmatmul.mubr.f32.gmra.mrb[0].mxu0 %v114
    %v272 = vpop.f32.mrb[0].mxu0
    %v273 = vadd.f32 %v87, %v272
    %v274 = vpop.f32.mrb[0].mxu0
    %v275 = vadd.f32 %v91, %v274
    %276 = vmatprep.mubr.f32.mxu0 0.0
    %277 = vmatmul.mubr.f32.gmra.mrb[0].mxu0 %v117
    %v278 = vpop.f32.mrb[0].mxu0
    %v279 = vadd.f32 %v87, %v278
    %v280 = vpop.f32.mrb[0].mxu0
    %v281 = vadd.f32 %v91, %v280
    %282 = vmatprep.mubr.f32.mxu0 0.0
    %283 = vmatmul.mubr.f32.gmra.mrb[0].mxu0 %v120
    %v284 = vpop.f32.mrb[0].mxu0
    %v285 = vadd.f32 %v87, %v284
    %v286 = vpop.f32.mrb[0].mxu0
    %v287 = vadd.f32 %v91, %v286
    %288 = vmatprep.mubr.f32.mxu0 0.0
    %289 = vmatmul.mubr.f32.gmra.mrb[0].mxu0 %v123
    %v290 = vpop.f32.mrb[0].mxu0
    %v291 = vadd.f32 %v87, %v290
    %v292 = vpop.f32.mrb[0].mxu0
    %v293 = vadd.f32 %v91, %v292
    %294 = vmatprep.mubr.f32.mxu0 0.0
    %295 = vmatmul.mubr.f32.gmra.mrb[0].mxu0 %v126
    %v296 = vpop.f32.mrb[0].mxu0
    %v297 = vadd.f32 %v87, %v296
    %v298 = vpop.f32.mrb[0].mxu0
    %v299 = vadd.f32 %v91, %v298
    %300 = vmatprep.mubr.f32.mxu0 0.0
    %301 = vmatmul.mubr.f32.gmra.mrb[0].mxu0 %v129
    %v302 = vpop.f32.mrb[0].mxu0
    %v303 = vadd.f32 %v87, %v302
    %v304 = vpop.f32.mrb[0].mxu0
    %v305 = vadd.f32 %v91, %v304
    %306 = vmatprep.mubr.f32.mxu0 0.0
    %307 = vmatmul.mubr.f32.gmra.mrb[0].mxu0 %v132
    %v308 = vpop.f32.mrb[0].mxu0
    %v309 = vadd.f32 %v87, %v308
    %v310 = vpop.f32.mrb[0].mxu0
    %v311 = vadd.f32 %v91, %v310
    %312 = vmatprep.mubr.f32.mxu0 0.0
    %313 = vmatmul.mubr.f32.gmra.mrb[0].mxu0 %v135
    %v314 = vpop.f32.mrb[0].mxu0
    %v315 = vadd.f32 %v87, %v314
    %v316 = vpop.f32.mrb[0].mxu0
    %v317 = vadd.f32 %v91, %v316
    %318 = vmatprep.mubr.f32.mxu0 0.0
    %319 = vmatmul.mubr.f32.gmra.mrb[0].mxu0 %v138
    %v320 = vpop.f32.mrb[0].mxu0
    %v321 = vadd.f32 %v87, %v320
    %v322 = vpop.f32.mrb[0].mxu0
    %v323 = vadd.f32 %v91, %v322
    %324 = vmatprep.mubr.f32.mxu0 0.0
    %325 = vmatmul.mubr.f32.gmra.mrb[0].mxu0 %v141
    %v326 = vpop.f32.mrb[0].mxu0
    %v327 = vadd.f32 %v87, %v326
    %v328 = vpop.f32.mrb[0].mxu0
    %v329 = vadd.f32 %v91, %v328
    %330 = vmatprep.mubr.f32.mxu0 0.0
    %331 = vmatmul.mubr.f32.gmra.mrb[0].mxu0 %v144
    %v332 = vpop.f32.mrb[0].mxu0
    %v333 = vadd.f32 %v87, %v332
    %v334 = vpop.f32.mrb[0].mxu0
    %v335 = vadd.f32 %v91, %v334
    %336 = vmatprep.mubr.f32.mxu0 0.0
    %337 = vmatmul.mubr.f32.gmra.mrb[0].mxu0 %v147
    %v338 = vpop.f32.mrb[0].mxu0
    %v339 = vadd.f32 %v87, %v338
    %v340 = vpop.f32.mrb[0].mxu0
    %v341 = vadd.f32 %v91, %v340
    %342 = vmatprep.mubr.f32.mxu0 0.0
    %343 = vmatmul.mubr.f32.gmra.mrb[0].mxu0 %v150
    %v344 = vpop.f32.mrb[0].mxu0
    %v345 = vadd.f32 %v87, %v344
    %v346 = vpop.f32.mrb[0].mxu0
    %v347 = vadd.f32 %v91, %v346
    %348 = vmatprep.mubr.f32.mxu0 0.0
    %349 = vmatmul.mubr.f32.gmra.mrb[0].mxu0 %v153
    %v350 = vpop.f32.mrb[0].mxu0
    %v351 = vadd.f32 %v87, %v350
    %v352 = vpop.f32.mrb[0].mxu0
    %v353 = vadd.f32 %v91, %v352
    %354 = vmatprep.mubr.f32.mxu0 0.0
    %355 = vmatmul.mubr.f32.gmra.mrb[0].mxu0 %v156
    %v356 = vpop.f32.mrb[0].mxu0
    %v357 = vadd.f32 %v87, %v356
    %v358 = vpop.f32.mrb[0].mxu0
    %v359 = vadd.f32 %v91, %v358
    %360 = vmatprep.mubr.f32.mxu0 0.0
    %361 = vmatmul.mubr.f32.gmra.mrb[0].mxu0 %v159
    %v362 = vpop.f32.mrb[0].mxu0
    %v363 = vadd.f32 %v87, %v362
    %v364 = vpop.f32.mrb[0].mxu0
    %v365 = vadd.f32 %v91, %v364
    %366 = vmatprep.mubr.f32.mxu0 0.0
    %367 = vmatmul.mubr.f32.gmra.mrb[0].mxu0 %v162
    %v368 = vpop.f32.mrb[0].mxu0
    %v369 = vadd.f32 %v87, %v368
    %v370 = vpop.f32.mrb[0].mxu0
    %v371 = vadd.f32 %v91, %v370
    %372 = vmatprep.mubr.f32.mxu0 0.0
    %373 = vmatmul.mubr.f32.gmra.mrb[0].mxu0 %v165
    %v374 = vpop.f32.mrb[0].mxu0
    %v375 = vadd.f32 %v87, %v374
    %v376 = vpop.f32.mrb[0].mxu0
    %v377 = vadd.f32 %v91, %v376
    %378 = vmatprep.mubr.f32.mxu0 0.0
    %379 = vmatmul.mubr.f32.gmra.mrb[0].mxu0 %v168
    %v380 = vpop.f32.mrb[0].mxu0
    %v381 = vadd.f32 %v87, %v380
    %v382 = vpop.f32.mrb[0].mxu0
    %v383 = vadd.f32 %v91, %v382
    %384 = vdwg.mxu0
    %v385 = vmax.f32 %v237, 0.0
    %v386 = vmax.f32 %v239, 0.0
    %v387 = vmax.f32 %v243, 0.0
    %v388 = vmax.f32 %v245, 0.0
    %v389 = vmax.f32 %v249, 0.0
    %v390 = vmax.f32 %v251, 0.0
    %v391 = vmax.f32 %v255, 0.0
    %v392 = vmax.f32 %v257, 0.0
    %v393 = vmax.f32 %v261, 0.0
    %v394 = vmax.f32 %v263, 0.0
    %v395 = vmax.f32 %v267, 0.0
    %v396 = vmax.f32 %v269, 0.0
    %v397 = vmax.f32 %v273, 0.0
    %v398 = vmax.f32 %v275, 0.0
    %v399 = vmax.f32 %v279, 0.0
    %v400 = vmax.f32 %v281, 0.0
    %v401 = vmax.f32 %v285, 0.0
    %v402 = vmax.f32 %v287, 0.0
    %v403 = vmax.f32 %v291, 0.0
    %v404 = vmax.f32 %v293, 0.0
    %v405 = vmax.f32 %v297, 0.0
    %v406 = vmax.f32 %v299, 0.0
    %v407 = vmax.f32 %v303, 0.0
    %v408 = vmax.f32 %v305, 0.0
    %v409 = vmax.f32 %v309, 0.0
    %v410 = vmax.f32 %v311, 0.0
    %v411 = vmax.f32 %v315, 0.0
    %v412 = vmax.f32 %v317, 0.0
    %v413 = vmax.f32 %v321, 0.0
    %v414 = vmax.f32 %v323, 0.0
    %v415 = vmax.f32 %v327, 0.0
    %v416 = vmax.f32 %v329, 0.0
    %v417 = vmax.f32 %v333, 0.0
    %v418 = vmax.f32 %v335, 0.0
    %v419 = vmax.f32 %v339, 0.0
    %v420 = vmax.f32 %v341, 0.0
    %v421 = vmax.f32 %v345, 0.0
    %v422 = vmax.f32 %v347, 0.0
    %v423 = vmax.f32 %v351, 0.0
    %v424 = vmax.f32 %v353, 0.0
    %v425 = vmax.f32 %v357, 0.0
    %v426 = vmax.f32 %v359, 0.0
    %v427 = vmax.f32 %v363, 0.0
    %v428 = vmax.f32 %v365, 0.0
    %v429 = vmax.f32 %v369, 0.0
    %v430 = vmax.f32 %v371, 0.0
    %v431 = vmax.f32 %v375, 0.0
    %v432 = vmax.f32 %v377, 0.0
    %v433 = vmax.f32 %v381, 0.0
    %v434 = vmax.f32 %v383, 0.0
    %v435 = vld [vmem:[#allocation2] sm:$0xff]
    %v436 = vld [vmem:[#allocation2 + $0x8] sm:$0xff]
    %v437 = vld [vmem:[#allocation2 + $0x10] sm:$0xff]
    %v438 = vld [vmem:[#allocation2 + $0x18] sm:$0xff]
    %v439 = vld [vmem:[#allocation2 + $0x20] sm:$0xff]
    %v440 = vld [vmem:[#allocation2 + $0x28] sm:$0xff]
    %v441 = vld [vmem:[#allocation2 + $0x30] sm:$0xff]
    %v442 = vld [vmem:[#allocation2 + $0x38] sm:$0xff]
    %v443 = vld [vmem:[#allocation2 + $0x40] sm:$0xff]
    %v444 = vld [vmem:[#allocation2 + $0x48] sm:$0xff]
    %v445 = vld [vmem:[#allocation2 + $0x50] sm:$0xff]
    %v446 = vld [vmem:[#allocation2 + $0x58] sm:$0xff]
    %v447 = vld [vmem:[#allocation2 + $0x60] sm:$0xff]
    %v448 = vld [vmem:[#allocation2 + $0x68] sm:$0xff]
    %v449 = vld [vmem:[#allocation2 + $0x70] sm:$0xff]
    %v450 = vld [vmem:[#allocation2 + $0x78] sm:$0xff]
    %v451 = vld [vmem:[#allocation2 + $0x80] sm:$0xff]
    %v452 = vld [vmem:[#allocation2 + $0x88] sm:$0xff]
    %v453 = vld [vmem:[#allocation2 + $0x90] sm:$0xff]
    %v454 = vld [vmem:[#allocation2 + $0x98] sm:$0xff]
    %v455 = vld [vmem:[#allocation2 + $0xa0] sm:$0xff]
    %v456 = vld [vmem:[#allocation2 + $0xa8] sm:$0xff]
    %v457 = vld [vmem:[#allocation2 + $0xb0] sm:$0xff]
    %v458 = vld [vmem:[#allocation2 + $0xb8] sm:$0xff]
    %v459 = vld [vmem:[#allocation2 + $0xc0] sm:$0xff]
    %v460 = vld [vmem:[#allocation2 + $0xc8] sm:$0xff]
    %v461 = vld [vmem:[#allocation2 + $0xd0] sm:$0xff]
    %v462 = vld [vmem:[#allocation2 + $0xd8] sm:$0xff]
    %v463 = vld [vmem:[#allocation2 + $0xe0] sm:$0xff]
    %v464 = vld [vmem:[#allocation2 + $0xe8] sm:$0xff]
    %v465 = vld [vmem:[#allocation2 + $0xf0] sm:$0xff]
    %v466 = vld [vmem:[#allocation2 + $0xf8] sm:$0xff]
    %v467 = vld [vmem:[#allocation2 + $0x100] sm:$0xff]
    %v468 = vld [vmem:[#allocation2 + $0x108] sm:$0xff]
    %v469 = vld [vmem:[#allocation2 + $0x110] sm:$0xff]
    %v470 = vld [vmem:[#allocation2 + $0x118] sm:$0xff]
    %v471 = vld [vmem:[#allocation2 + $0x120] sm:$0xff]
    %v472 = vld [vmem:[#allocation2 + $0x128] sm:$0xff]
    %v473 = vld [vmem:[#allocation2 + $0x130] sm:$0xff]
    %v474 = vld [vmem:[#allocation2 + $0x138] sm:$0xff]
    %v475 = vld [vmem:[#allocation2 + $0x140] sm:$0xff]
    %v476 = vld [vmem:[#allocation2 + $0x148] sm:$0xff]
    %v477 = vld [vmem:[#allocation2 + $0x150] sm:$0xff]
    %v478 = vld [vmem:[#allocation2 + $0x158] sm:$0xff]
    %v479 = vld [vmem:[#allocation2 + $0x160] sm:$0xff]
    %v480 = vld [vmem:[#allocation2 + $0x168] sm:$0xff]
    %v481 = vld [vmem:[#allocation2 + $0x170] sm:$0xff]
    %v482 = vld [vmem:[#allocation2 + $0x178] sm:$0xff]
    %v483 = vld [vmem:[#allocation2 + $0x180] sm:$0xff]
    %v484 = vld [vmem:[#allocation2 + $0x188] sm:$0xff]
    %v485 = vld [vmem:[#allocation2 + $0x190] sm:$0xff]
    %v486 = vld [vmem:[#allocation2 + $0x198] sm:$0xff]
    %v487 = vld [vmem:[#allocation2 + $0x1a0] sm:$0xff]
    %v488 = vld [vmem:[#allocation2 + $0x1a8] sm:$0xff]
    %v489 = vld [vmem:[#allocation2 + $0x1b0] sm:$0xff]
    %v490 = vld [vmem:[#allocation2 + $0x1b8] sm:$0xff]
    %v491 = vld [vmem:[#allocation2 + $0x1c0] sm:$0xff]
    %v492 = vld [vmem:[#allocation2 + $0x1c8] sm:$0xff]
    %v493 = vld [vmem:[#allocation2 + $0x1d0] sm:$0xff]
    %v494 = vld [vmem:[#allocation2 + $0x1d8] sm:$0xff]
    %v495 = vld [vmem:[#allocation2 + $0x1e0] sm:$0xff]
    %v496 = vld [vmem:[#allocation2 + $0x1e8] sm:$0xff]
    %v497 = vld [vmem:[#allocation2 + $0x1f0] sm:$0xff]
    %v498 = vld [vmem:[#allocation2 + $0x1f8] sm:$0xff]
    %v499 = vld [vmem:[%s4] sm:$0x3]
    %v501 = vlaneseq
    %v502 = vshrl.u32 %v501, 7
    %v503 = vsub.s32 0, %v502
    %v504 = vrot.slane %v499, %v503
    %v505 = vlaneseq
    %v506 = vshrl.u32 %v505, 7
    %v507 = vsub.s32 1, %v506
    %v508 = vrot.slane %v499, %v507
    %511 = vmatprep.subr.mxu0 %v436
    %512 = vmatpush1.msra.mxu0 %v435
    %513 = vmatprep.subr.mxu0 %v438
    %514 = vmatpush1.msra.mxu0 %v437
    %515 = vmatprep.subr.mxu0 %v440
    %516 = vmatpush1.msra.mxu0 %v439
    %517 = vmatprep.subr.mxu0 %v442
    %518 = vmatpush1.msra.mxu0 %v441
    %519 = vmatprep.subr.mxu0 %v444
    %520 = vmatpush1.msra.mxu0 %v443
    %521 = vmatprep.subr.mxu0 %v446
    %522 = vmatpush1.msra.mxu0 %v445
    %523 = vmatprep.subr.mxu0 %v448
    %524 = vmatpush1.msra.mxu0 %v447
    %525 = vmatprep.subr.mxu0 %v450
    %526 = vmatpush1.msra.mxu0 %v449
    %527 = vmatprep.subr.mxu0 %v452
    %528 = vmatpush1.msra.mxu0 %v451
    %529 = vmatprep.subr.mxu0 %v454
    %530 = vmatpush1.msra.mxu0 %v453
    %531 = vmatprep.subr.mxu0 %v456
    %532 = vmatpush1.msra.mxu0 %v455
    %533 = vmatprep.subr.mxu0 %v458
    %534 = vmatpush1.msra.mxu0 %v457
    %535 = vmatprep.subr.mxu0 %v460
    %536 = vmatpush1.msra.mxu0 %v459
    %537 = vmatprep.subr.mxu0 %v462
    %538 = vmatpush1.msra.mxu0 %v461
    %539 = vmatprep.subr.mxu0 %v464
    %540 = vmatpush1.msra.mxu0 %v463
    %541 = vmatprep.subr.mxu0 %v466
    %542 = vmatpush1.msra.mxu0 %v465
    %543 = vmatprep.subr.mxu0 %v468
    %544 = vmatpush1.msra.mxu0 %v467
    %545 = vmatprep.subr.mxu0 %v470
    %546 = vmatpush1.msra.mxu0 %v469
    %547 = vmatprep.subr.mxu0 %v472
    %548 = vmatpush1.msra.mxu0 %v471
    %549 = vmatprep.subr.mxu0 %v474
    %550 = vmatpush1.msra.mxu0 %v473
    %551 = vmatprep.subr.mxu0 %v476
    %552 = vmatpush1.msra.mxu0 %v475
    %553 = vmatprep.subr.mxu0 %v478
    %554 = vmatpush1.msra.mxu0 %v477
    %555 = vmatprep.subr.mxu0 %v480
    %556 = vmatpush1.msra.mxu0 %v479
    %557 = vmatprep.subr.mxu0 %v482
    %558 = vmatpush1.msra.mxu0 %v481
    %559 = vmatprep.subr.mxu0 %v484
    %560 = vmatpush1.msra.mxu0 %v483
    %561 = vmatprep.subr.mxu0 %v486
    %562 = vmatpush1.msra.mxu0 %v485
    %563 = vmatprep.subr.mxu0 %v488
    %564 = vmatpush1.msra.mxu0 %v487
    %565 = vmatprep.subr.mxu0 %v490
    %566 = vmatpush1.msra.mxu0 %v489
    %567 = vmatprep.subr.mxu0 %v492
    %568 = vmatpush1.msra.mxu0 %v491
    %569 = vmatprep.subr.mxu0 %v494
    %570 = vmatpush1.msra.mxu0 %v493
    %571 = vmatprep.subr.mxu0 %v496
    %572 = vmatpush1.msra.mxu0 %v495
    %573 = vmatprep.subr.mxu0 %v498
    %574 = vmatpush1.msra.mxu0 %v497
    %575 = vmatprep.mubr.f32.mxu0 %v386
    %576 = vmatmul.mubr.f32.gmra.mrb[0].mxu0 %v385
    %v577 = vpop.f32.mrb[0].mxu0
    %v578 = vadd.f32 %v504, %v577
    %v579 = vpop.f32.mrb[0].mxu0
    %v580 = vadd.f32 %v508, %v579
    %581 = vmatprep.mubr.f32.mxu0 %v388
    %582 = vmatmul.mubr.f32.gmra.mrb[0].mxu0 %v387
    %v583 = vpop.f32.mrb[0].mxu0
    %v584 = vadd.f32 %v504, %v583
    %v585 = vpop.f32.mrb[0].mxu0
    %v586 = vadd.f32 %v508, %v585
    %587 = vmatprep.mubr.f32.mxu0 %v390
    %588 = vmatmul.mubr.f32.gmra.mrb[0].mxu0 %v389
    %v589 = vpop.f32.mrb[0].mxu0
    %v590 = vadd.f32 %v504, %v589
    %v591 = vpop.f32.mrb[0].mxu0
    %v592 = vadd.f32 %v508, %v591
    %593 = vmatprep.mubr.f32.mxu0 %v392
    %594 = vmatmul.mubr.f32.gmra.mrb[0].mxu0 %v391
    %v595 = vpop.f32.mrb[0].mxu0
    %v596 = vadd.f32 %v504, %v595
    %v597 = vpop.f32.mrb[0].mxu0
    %v598 = vadd.f32 %v508, %v597
    %599 = vmatprep.mubr.f32.mxu0 %v394
    %600 = vmatmul.mubr.f32.gmra.mrb[0].mxu0 %v393
    %v601 = vpop.f32.mrb[0].mxu0
    %v602 = vadd.f32 %v504, %v601
    %v603 = vpop.f32.mrb[0].mxu0
    %v604 = vadd.f32 %v508, %v603
    %605 = vmatprep.mubr.f32.mxu0 %v396
    %606 = vmatmul.mubr.f32.gmra.mrb[0].mxu0 %v395
    %v607 = vpop.f32.mrb[0].mxu0
    %v608 = vadd.f32 %v504, %v607
    %v609 = vpop.f32.mrb[0].mxu0
    %v610 = vadd.f32 %v508, %v609
    %611 = vmatprep.mubr.f32.mxu0 %v398
    %612 = vmatmul.mubr.f32.gmra.mrb[0].mxu0 %v397
    %v613 = vpop.f32.mrb[0].mxu0
    %v614 = vadd.f32 %v504, %v613
    %v615 = vpop.f32.mrb[0].mxu0
    %v616 = vadd.f32 %v508, %v615
    %617 = vmatprep.mubr.f32.mxu0 %v400
    %618 = vmatmul.mubr.f32.gmra.mrb[0].mxu0 %v399
    %v619 = vpop.f32.mrb[0].mxu0
    %v620 = vadd.f32 %v504, %v619
    %v621 = vpop.f32.mrb[0].mxu0
    %v622 = vadd.f32 %v508, %v621
    %623 = vmatprep.mubr.f32.mxu0 %v402
    %624 = vmatmul.mubr.f32.gmra.mrb[0].mxu0 %v401
    %v625 = vpop.f32.mrb[0].mxu0
    %v626 = vadd.f32 %v504, %v625
    %v627 = vpop.f32.mrb[0].mxu0
    %v628 = vadd.f32 %v508, %v627
    %629 = vmatprep.mubr.f32.mxu0 %v404
    %630 = vmatmul.mubr.f32.gmra.mrb[0].mxu0 %v403
    %v631 = vpop.f32.mrb[0].mxu0
    %v632 = vadd.f32 %v504, %v631
    %v633 = vpop.f32.mrb[0].mxu0
    %v634 = vadd.f32 %v508, %v633
    %635 = vmatprep.mubr.f32.mxu0 %v406
    %636 = vmatmul.mubr.f32.gmra.mrb[0].mxu0 %v405
    %v637 = vpop.f32.mrb[0].mxu0
    %v638 = vadd.f32 %v504, %v637
    %v639 = vpop.f32.mrb[0].mxu0
    %v640 = vadd.f32 %v508, %v639
    %641 = vmatprep.mubr.f32.mxu0 %v408
    %642 = vmatmul.mubr.f32.gmra.mrb[0].mxu0 %v407
    %v643 = vpop.f32.mrb[0].mxu0
    %v644 = vadd.f32 %v504, %v643
    %v645 = vpop.f32.mrb[0].mxu0
    %v646 = vadd.f32 %v508, %v645
    %647 = vmatprep.mubr.f32.mxu0 %v410
    %648 = vmatmul.mubr.f32.gmra.mrb[0].mxu0 %v409
    %v649 = vpop.f32.mrb[0].mxu0
    %v650 = vadd.f32 %v504, %v649
    %v651 = vpop.f32.mrb[0].mxu0
    %v652 = vadd.f32 %v508, %v651
    %653 = vmatprep.mubr.f32.mxu0 %v412
    %654 = vmatmul.mubr.f32.gmra.mrb[0].mxu0 %v411
    %v655 = vpop.f32.mrb[0].mxu0
    %v656 = vadd.f32 %v504, %v655
    %v657 = vpop.f32.mrb[0].mxu0
    %v658 = vadd.f32 %v508, %v657
    %659 = vmatprep.mubr.f32.mxu0 %v414
    %660 = vmatmul.mubr.f32.gmra.mrb[0].mxu0 %v413
    %v661 = vpop.f32.mrb[0].mxu0
    %v662 = vadd.f32 %v504, %v661
    %v663 = vpop.f32.mrb[0].mxu0
    %v664 = vadd.f32 %v508, %v663
    %665 = vmatprep.mubr.f32.mxu0 %v416
    %666 = vmatmul.mubr.f32.gmra.mrb[0].mxu0 %v415
    %v667 = vpop.f32.mrb[0].mxu0
    %v668 = vadd.f32 %v504, %v667
    %v669 = vpop.f32.mrb[0].mxu0
    %v670 = vadd.f32 %v508, %v669
    %671 = vmatprep.mubr.f32.mxu0 %v418
    %672 = vmatmul.mubr.f32.gmra.mrb[0].mxu0 %v417
    %v673 = vpop.f32.mrb[0].mxu0
    %v674 = vadd.f32 %v504, %v673
    %v675 = vpop.f32.mrb[0].mxu0
    %v676 = vadd.f32 %v508, %v675
    %677 = vmatprep.mubr.f32.mxu0 %v420
    %678 = vmatmul.mubr.f32.gmra.mrb[0].mxu0 %v419
    %v679 = vpop.f32.mrb[0].mxu0
    %v680 = vadd.f32 %v504, %v679
    %v681 = vpop.f32.mrb[0].mxu0
    %v682 = vadd.f32 %v508, %v681
    %683 = vmatprep.mubr.f32.mxu0 %v422
    %684 = vmatmul.mubr.f32.gmra.mrb[0].mxu0 %v421
    %v685 = vpop.f32.mrb[0].mxu0
    %v686 = vadd.f32 %v504, %v685
    %v687 = vpop.f32.mrb[0].mxu0
    %v688 = vadd.f32 %v508, %v687
    %689 = vmatprep.mubr.f32.mxu0 %v424
    %690 = vmatmul.mubr.f32.gmra.mrb[0].mxu0 %v423
    %v691 = vpop.f32.mrb[0].mxu0
    %v692 = vadd.f32 %v504, %v691
    %v693 = vpop.f32.mrb[0].mxu0
    %v694 = vadd.f32 %v508, %v693
    %695 = vmatprep.mubr.f32.mxu0 %v426
    %696 = vmatmul.mubr.f32.gmra.mrb[0].mxu0 %v425
    %v697 = vpop.f32.mrb[0].mxu0
    %v698 = vadd.f32 %v504, %v697
    %v699 = vpop.f32.mrb[0].mxu0
    %v700 = vadd.f32 %v508, %v699
    %701 = vmatprep.mubr.f32.mxu0 %v428
    %702 = vmatmul.mubr.f32.gmra.mrb[0].mxu0 %v427
    %v703 = vpop.f32.mrb[0].mxu0
    %v704 = vadd.f32 %v504, %v703
    %v705 = vpop.f32.mrb[0].mxu0
    %v706 = vadd.f32 %v508, %v705
    %707 = vmatprep.mubr.f32.mxu0 %v430
    %708 = vmatmul.mubr.f32.gmra.mrb[0].mxu0 %v429
    %v709 = vpop.f32.mrb[0].mxu0
    %v710 = vadd.f32 %v504, %v709
    %v711 = vpop.f32.mrb[0].mxu0
    %v712 = vadd.f32 %v508, %v711
    %713 = vmatprep.mubr.f32.mxu0 %v432
    %714 = vmatmul.mubr.f32.gmra.mrb[0].mxu0 %v431
    %v715 = vpop.f32.mrb[0].mxu0
    %v716 = vadd.f32 %v504, %v715
    %v717 = vpop.f32.mrb[0].mxu0
    %v718 = vadd.f32 %v508, %v717
    %719 = vmatprep.mubr.f32.mxu0 %v434
    %720 = vmatmul.mubr.f32.gmra.mrb[0].mxu0 %v433
    %v721 = vpop.f32.mrb[0].mxu0
    %v722 = vadd.f32 %v504, %v721
    %v723 = vpop.f32.mrb[0].mxu0
    %v724 = vadd.f32 %v508, %v723
    %725 = vdwg.mxu0
    %v726 = vmax.f32 %v578, 0.0
    %v727 = vmax.f32 %v580, 0.0
    %v728 = vmax.f32 %v584, 0.0
    %v729 = vmax.f32 %v586, 0.0
    %v730 = vmax.f32 %v590, 0.0
    %v731 = vmax.f32 %v592, 0.0
    %v732 = vmax.f32 %v596, 0.0
    %v733 = vmax.f32 %v598, 0.0
    %v734 = vmax.f32 %v602, 0.0
    %v735 = vmax.f32 %v604, 0.0
    %v736 = vmax.f32 %v608, 0.0
    %v737 = vmax.f32 %v610, 0.0
    %v738 = vmax.f32 %v614, 0.0
    %v739 = vmax.f32 %v616, 0.0
    %v740 = vmax.f32 %v620, 0.0
    %v741 = vmax.f32 %v622, 0.0
    %v742 = vmax.f32 %v626, 0.0
    %v743 = vmax.f32 %v628, 0.0
    %v744 = vmax.f32 %v632, 0.0
    %v745 = vmax.f32 %v634, 0.0
    %v746 = vmax.f32 %v638, 0.0
    %v747 = vmax.f32 %v640, 0.0
    %v748 = vmax.f32 %v644, 0.0
    %v749 = vmax.f32 %v646, 0.0
    %v750 = vmax.f32 %v650, 0.0
    %v751 = vmax.f32 %v652, 0.0
    %v752 = vmax.f32 %v656, 0.0
    %v753 = vmax.f32 %v658, 0.0
    %v754 = vmax.f32 %v662, 0.0
    %v755 = vmax.f32 %v664, 0.0
    %v756 = vmax.f32 %v668, 0.0
    %v757 = vmax.f32 %v670, 0.0
    %v758 = vmax.f32 %v674, 0.0
    %v759 = vmax.f32 %v676, 0.0
    %v760 = vmax.f32 %v680, 0.0
    %v761 = vmax.f32 %v682, 0.0
    %v762 = vmax.f32 %v686, 0.0
    %v763 = vmax.f32 %v688, 0.0
    %v764 = vmax.f32 %v692, 0.0
    %v765 = vmax.f32 %v694, 0.0
    %v766 = vmax.f32 %v698, 0.0
    %v767 = vmax.f32 %v700, 0.0
    %v768 = vmax.f32 %v704, 0.0
    %v769 = vmax.f32 %v706, 0.0
    %v770 = vmax.f32 %v710, 0.0
    %v771 = vmax.f32 %v712, 0.0
    %v772 = vmax.f32 %v716, 0.0
    %v773 = vmax.f32 %v718, 0.0
    %v774 = vmax.f32 %v722, 0.0
    %v775 = vmax.f32 %v724, 0.0
    %v776 = vld [vmem:[#allocation5] sm:$0xff]
    %v777 = vld [vmem:[#allocation5 + $0x8] sm:$0xff]
    %v778 = vld [vmem:[#allocation5 + $0x10] sm:$0xff]
    %v779 = vld [vmem:[#allocation5 + $0x18] sm:$0xff]
    %v780 = vld [vmem:[#allocation5 + $0x20] sm:$0xff]
    %v781 = vld [vmem:[#allocation5 + $0x28] sm:$0xff]
    %v782 = vld [vmem:[#allocation5 + $0x30] sm:$0xff]
    %v783 = vld [vmem:[#allocation5 + $0x38] sm:$0xff]
    %v784 = vld [vmem:[#allocation5 + $0x40] sm:$0xff]
    %v785 = vld [vmem:[#allocation5 + $0x48] sm:$0xff]
    %v786 = vld [vmem:[#allocation5 + $0x50] sm:$0xff]
    %v787 = vld [vmem:[#allocation5 + $0x58] sm:$0xff]
    %v788 = vld [vmem:[#allocation5 + $0x60] sm:$0xff]
    %v789 = vld [vmem:[#allocation5 + $0x68] sm:$0xff]
    %v790 = vld [vmem:[#allocation5 + $0x70] sm:$0xff]
    %v791 = vld [vmem:[#allocation5 + $0x78] sm:$0xff]
    %v792 = vld [vmem:[#allocation5 + $0x80] sm:$0xff]
    %v793 = vld [vmem:[#allocation5 + $0x88] sm:$0xff]
    %v794 = vld [vmem:[#allocation5 + $0x90] sm:$0xff]
    %v795 = vld [vmem:[#allocation5 + $0x98] sm:$0xff]
    %v796 = vld [vmem:[#allocation5 + $0xa0] sm:$0xff]
    %v797 = vld [vmem:[#allocation5 + $0xa8] sm:$0xff]
    %v798 = vld [vmem:[#allocation5 + $0xb0] sm:$0xff]
    %v799 = vld [vmem:[#allocation5 + $0xb8] sm:$0xff]
    %v800 = vld [vmem:[#allocation5 + $0xc0] sm:$0xff]
    %v801 = vld [vmem:[#allocation5 + $0xc8] sm:$0xff]
    %v802 = vld [vmem:[#allocation5 + $0xd0] sm:$0xff]
    %v803 = vld [vmem:[#allocation5 + $0xd8] sm:$0xff]
    %v804 = vld [vmem:[#allocation5 + $0xe0] sm:$0xff]
    %v805 = vld [vmem:[#allocation5 + $0xe8] sm:$0xff]
    %v806 = vld [vmem:[#allocation5 + $0xf0] sm:$0xff]
    %v807 = vld [vmem:[#allocation5 + $0xf8] sm:$0xff]
    %v808 = vld [vmem:[%s6] sm:$0x1]
    %v810 = vlaneseq
    %v811 = vshrl.u32 %v810, 7
    %v812 = vsub.s32 0, %v811
    %v813 = vrot.slane %v808, %v812
    %815 = vmatprep.subr.mxu0 0.0
    %816 = vmatpush1.msra.mxu0 %v776
    %817 = vmatprep.subr.mxu0 0.0
    %818 = vmatpush1.msra.mxu0 %v777
    %819 = vmatprep.subr.mxu0 0.0
    %820 = vmatpush1.msra.mxu0 %v778
    %821 = vmatprep.subr.mxu0 0.0
    %822 = vmatpush1.msra.mxu0 %v779
    %823 = vmatprep.subr.mxu0 0.0
    %824 = vmatpush1.msra.mxu0 %v780
    %825 = vmatprep.subr.mxu0 0.0
    %826 = vmatpush1.msra.mxu0 %v781
    %827 = vmatprep.subr.mxu0 0.0
    %828 = vmatpush1.msra.mxu0 %v782
    %829 = vmatprep.subr.mxu0 0.0
    %830 = vmatpush1.msra.mxu0 %v783
    %831 = vmatprep.subr.mxu0 0.0
    %832 = vmatpush1.msra.mxu0 %v784
    %833 = vmatprep.subr.mxu0 0.0
    %834 = vmatpush1.msra.mxu0 %v785
    %835 = vmatprep.subr.mxu0 0.0
    %836 = vmatpush1.msra.mxu0 %v786
    %837 = vmatprep.subr.mxu0 0.0
    %838 = vmatpush1.msra.mxu0 %v787
    %839 = vmatprep.subr.mxu0 0.0
    %840 = vmatpush1.msra.mxu0 %v788
    %841 = vmatprep.subr.mxu0 0.0
    %842 = vmatpush1.msra.mxu0 %v789
    %843 = vmatprep.subr.mxu0 0.0
    %844 = vmatpush1.msra.mxu0 %v790
    %845 = vmatprep.subr.mxu0 0.0
    %846 = vmatpush1.msra.mxu0 %v791
    %847 = vmatprep.subr.mxu0 0.0
    %848 = vmatpush1.msra.mxu0 %v792
    %849 = vmatprep.subr.mxu0 0.0
    %850 = vmatpush1.msra.mxu0 %v793
    %851 = vmatprep.subr.mxu0 0.0
    %852 = vmatpush1.msra.mxu0 %v794
    %853 = vmatprep.subr.mxu0 0.0
    %854 = vmatpush1.msra.mxu0 %v795
    %855 = vmatprep.subr.mxu0 0.0
    %856 = vmatpush1.msra.mxu0 %v796
    %857 = vmatprep.subr.mxu0 0.0
    %858 = vmatpush1.msra.mxu0 %v797
    %859 = vmatprep.subr.mxu0 0.0
    %860 = vmatpush1.msra.mxu0 %v798
    %861 = vmatprep.subr.mxu0 0.0
    %862 = vmatpush1.msra.mxu0 %v799
    %863 = vmatprep.subr.mxu0 0.0
    %864 = vmatpush1.msra.mxu0 %v800
    %865 = vmatprep.subr.mxu0 0.0
    %866 = vmatpush1.msra.mxu0 %v801
    %867 = vmatprep.subr.mxu0 0.0
    %868 = vmatpush1.msra.mxu0 %v802
    %869 = vmatprep.subr.mxu0 0.0
    %870 = vmatpush1.msra.mxu0 %v803
    %871 = vmatprep.subr.mxu0 0.0
    %872 = vmatpush1.msra.mxu0 %v804
    %873 = vmatprep.subr.mxu0 0.0
    %874 = vmatpush1.msra.mxu0 %v805
    %875 = vmatprep.subr.mxu0 0.0
    %876 = vmatpush1.msra.mxu0 %v806
    %877 = vmatprep.subr.mxu0 0.0
    %878 = vmatpush1.msra.mxu0 %v807
    %879 = vmatprep.mubr.f32.mxu0 %v727
    %880 = vmatmul.mubr.f32.gmra.mrb[0].mxu0 %v726
    %v881 = vpop.f32.mrb[0].mxu0
    %v882 = vadd.f32 %v813, %v881
    %v883 = vpop.f32.mrb[0].mxu0
    %884 = vmatprep.mubr.f32.mxu0 %v729
    %885 = vmatmul.mubr.f32.gmra.mrb[0].mxu0 %v728
    %v886 = vpop.f32.mrb[0].mxu0
    %v887 = vadd.f32 %v813, %v886
    %v888 = vpop.f32.mrb[0].mxu0
    %889 = vmatprep.mubr.f32.mxu0 %v731
    %890 = vmatmul.mubr.f32.gmra.mrb[0].mxu0 %v730
    %v891 = vpop.f32.mrb[0].mxu0
    %v892 = vadd.f32 %v813, %v891
    %v893 = vpop.f32.mrb[0].mxu0
    %894 = vmatprep.mubr.f32.mxu0 %v733
    %895 = vmatmul.mubr.f32.gmra.mrb[0].mxu0 %v732
    %v896 = vpop.f32.mrb[0].mxu0
    %v897 = vadd.f32 %v813, %v896
    %v898 = vpop.f32.mrb[0].mxu0
    %899 = vmatprep.mubr.f32.mxu0 %v735
    %900 = vmatmul.mubr.f32.gmra.mrb[0].mxu0 %v734
    %v901 = vpop.f32.mrb[0].mxu0
    %v902 = vadd.f32 %v813, %v901
    %v903 = vpop.f32.mrb[0].mxu0
    %904 = vmatprep.mubr.f32.mxu0 %v737
    %905 = vmatmul.mubr.f32.gmra.mrb[0].mxu0 %v736
    %v906 = vpop.f32.mrb[0].mxu0
    %v907 = vadd.f32 %v813, %v906
    %v908 = vpop.f32.mrb[0].mxu0
    %909 = vmatprep.mubr.f32.mxu0 %v739
    %910 = vmatmul.mubr.f32.gmra.mrb[0].mxu0 %v738
    %v911 = vpop.f32.mrb[0].mxu0
    %v912 = vadd.f32 %v813, %v911
    %v913 = vpop.f32.mrb[0].mxu0
    %914 = vmatprep.mubr.f32.mxu0 %v741
    %915 = vmatmul.mubr.f32.gmra.mrb[0].mxu0 %v740
    %v916 = vpop.f32.mrb[0].mxu0
    %v917 = vadd.f32 %v813, %v916
    %v918 = vpop.f32.mrb[0].mxu0
    %919 = vmatprep.mubr.f32.mxu0 %v743
    %920 = vmatmul.mubr.f32.gmra.mrb[0].mxu0 %v742
    %v921 = vpop.f32.mrb[0].mxu0
    %v922 = vadd.f32 %v813, %v921
    %v923 = vpop.f32.mrb[0].mxu0
    %924 = vmatprep.mubr.f32.mxu0 %v745
    %925 = vmatmul.mubr.f32.gmra.mrb[0].mxu0 %v744
    %v926 = vpop.f32.mrb[0].mxu0
    %v927 = vadd.f32 %v813, %v926
    %v928 = vpop.f32.mrb[0].mxu0
    %929 = vmatprep.mubr.f32.mxu0 %v747
    %930 = vmatmul.mubr.f32.gmra.mrb[0].mxu0 %v746
    %v931 = vpop.f32.mrb[0].mxu0
    %v932 = vadd.f32 %v813, %v931
    %v933 = vpop.f32.mrb[0].mxu0
    %934 = vmatprep.mubr.f32.mxu0 %v749
    %935 = vmatmul.mubr.f32.gmra.mrb[0].mxu0 %v748
    %v936 = vpop.f32.mrb[0].mxu0
    %v937 = vadd.f32 %v813, %v936
    %v938 = vpop.f32.mrb[0].mxu0
    %939 = vmatprep.mubr.f32.mxu0 %v751
    %940 = vmatmul.mubr.f32.gmra.mrb[0].mxu0 %v750
    %v941 = vpop.f32.mrb[0].mxu0
    %v942 = vadd.f32 %v813, %v941
    %v943 = vpop.f32.mrb[0].mxu0
    %944 = vmatprep.mubr.f32.mxu0 %v753
    %945 = vmatmul.mubr.f32.gmra.mrb[0].mxu0 %v752
    %v946 = vpop.f32.mrb[0].mxu0
    %v947 = vadd.f32 %v813, %v946
    %v948 = vpop.f32.mrb[0].mxu0
    %949 = vmatprep.mubr.f32.mxu0 %v755
    %950 = vmatmul.mubr.f32.gmra.mrb[0].mxu0 %v754
    %v951 = vpop.f32.mrb[0].mxu0
    %v952 = vadd.f32 %v813, %v951
    %v953 = vpop.f32.mrb[0].mxu0
    %954 = vmatprep.mubr.f32.mxu0 %v757
    %955 = vmatmul.mubr.f32.gmra.mrb[0].mxu0 %v756
    %v956 = vpop.f32.mrb[0].mxu0
    %v957 = vadd.f32 %v813, %v956
    %v958 = vpop.f32.mrb[0].mxu0
    %959 = vmatprep.mubr.f32.mxu0 %v759
    %960 = vmatmul.mubr.f32.gmra.mrb[0].mxu0 %v758
    %v961 = vpop.f32.mrb[0].mxu0
    %v962 = vadd.f32 %v813, %v961
    %v963 = vpop.f32.mrb[0].mxu0
    %964 = vmatprep.mubr.f32.mxu0 %v761
    %965 = vmatmul.mubr.f32.gmra.mrb[0].mxu0 %v760
    %v966 = vpop.f32.mrb[0].mxu0
    %v967 = vadd.f32 %v813, %v966
    %v968 = vpop.f32.mrb[0].mxu0
    %969 = vmatprep.mubr.f32.mxu0 %v763
    %970 = vmatmul.mubr.f32.gmra.mrb[0].mxu0 %v762
    %v971 = vpop.f32.mrb[0].mxu0
    %v972 = vadd.f32 %v813, %v971
    %v973 = vpop.f32.mrb[0].mxu0
    %974 = vmatprep.mubr.f32.mxu0 %v765
    %975 = vmatmul.mubr.f32.gmra.mrb[0].mxu0 %v764
    %v976 = vpop.f32.mrb[0].mxu0
    %v977 = vadd.f32 %v813, %v976
    %v978 = vpop.f32.mrb[0].mxu0
    %979 = vmatprep.mubr.f32.mxu0 %v767
    %980 = vmatmul.mubr.f32.gmra.mrb[0].mxu0 %v766
    %v981 = vpop.f32.mrb[0].mxu0
    %v982 = vadd.f32 %v813, %v981
    %v983 = vpop.f32.mrb[0].mxu0
    %984 = vmatprep.mubr.f32.mxu0 %v769
    %985 = vmatmul.mubr.f32.gmra.mrb[0].mxu0 %v768
    %v986 = vpop.f32.mrb[0].mxu0
    %v987 = vadd.f32 %v813, %v986
    %v988 = vpop.f32.mrb[0].mxu0
    %989 = vmatprep.mubr.f32.mxu0 %v771
    %990 = vmatmul.mubr.f32.gmra.mrb[0].mxu0 %v770
    %v991 = vpop.f32.mrb[0].mxu0
    %v992 = vadd.f32 %v813, %v991
    %v993 = vpop.f32.mrb[0].mxu0
    %994 = vmatprep.mubr.f32.mxu0 %v773
    %995 = vmatmul.mubr.f32.gmra.mrb[0].mxu0 %v772
    %v996 = vpop.f32.mrb[0].mxu0
    %v997 = vadd.f32 %v813, %v996
    %v998 = vpop.f32.mrb[0].mxu0
    %999 = vmatprep.mubr.f32.mxu0 %v775
    %1000 = vmatmul.mubr.f32.gmra.mrb[0].mxu0 %v774
    %v1001 = vpop.f32.mrb[0].mxu0
    %v1002 = vadd.f32 %v813, %v1001
    %v1003 = vpop.f32.mrb[0].mxu0
    %1004 = vdwg.mxu0
    %1005 = vmax.xlane.f32.xlu0 %v882
    %v1006 = vpop.xlane.xlu0 %1005
    %1007 = vmax.xlane.f32.xlu0 %v887
    %v1008 = vpop.xlane.xlu0 %1007
    %1009 = vmax.xlane.f32.xlu0 %v892
    %v1010 = vpop.xlane.xlu0 %1009
    %1011 = vmax.xlane.f32.xlu0 %v897
    %v1012 = vpop.xlane.xlu0 %1011
    %1013 = vmax.xlane.f32.xlu0 %v902
    %v1014 = vpop.xlane.xlu0 %1013
    %1015 = vmax.xlane.f32.xlu0 %v907
    %v1016 = vpop.xlane.xlu0 %1015
    %1017 = vmax.xlane.f32.xlu0 %v912
    %v1018 = vpop.xlane.xlu0 %1017
    %1019 = vmax.xlane.f32.xlu0 %v917
    %v1020 = vpop.xlane.xlu0 %1019
    %1021 = vmax.xlane.f32.xlu0 %v922
    %v1022 = vpop.xlane.xlu0 %1021
    %1023 = vmax.xlane.f32.xlu0 %v927
    %v1024 = vpop.xlane.xlu0 %1023
    %1025 = vmax.xlane.f32.xlu0 %v932
    %v1026 = vpop.xlane.xlu0 %1025
    %1027 = vmax.xlane.f32.xlu0 %v937
    %v1028 = vpop.xlane.xlu0 %1027
    %1029 = vmax.xlane.f32.xlu0 %v942
    %v1030 = vpop.xlane.xlu0 %1029
    %1031 = vmax.xlane.f32.xlu0 %v947
    %v1032 = vpop.xlane.xlu0 %1031
    %1033 = vmax.xlane.f32.xlu0 %v952
    %v1034 = vpop.xlane.xlu0 %1033
    %1035 = vmax.xlane.f32.xlu0 %v957
    %v1036 = vpop.xlane.xlu0 %1035
    %1037 = vmax.xlane.f32.xlu0 %v962
    %v1038 = vpop.xlane.xlu0 %1037
    %1039 = vmax.xlane.f32.xlu0 %v967
    %v1040 = vpop.xlane.xlu0 %1039
    %1041 = vmax.xlane.f32.xlu0 %v972
    %v1042 = vpop.xlane.xlu0 %1041
    %1043 = vmax.xlane.f32.xlu0 %v977
    %v1044 = vpop.xlane.xlu0 %1043
    %1045 = vmax.xlane.f32.xlu0 %v982
    %v1046 = vpop.xlane.xlu0 %1045
    %1047 = vmax.xlane.f32.xlu0 %v987
    %v1048 = vpop.xlane.xlu0 %1047
    %1049 = vmax.xlane.f32.xlu0 %v992
    %v1050 = vpop.xlane.xlu0 %1049
    %1051 = vmax.xlane.f32.xlu0 %v997
    %v1052 = vpop.xlane.xlu0 %1051
    %1053 = vmax.xlane.f32.xlu0 %v1002
    %v1054 = vpop.xlane.xlu0 %1053
    %v1055 = vsub.f32 %v882, %v1006
    %v1056 = vsub.f32 %v887, %v1008
    %v1057 = vsub.f32 %v892, %v1010
    %v1058 = vsub.f32 %v897, %v1012
    %v1059 = vsub.f32 %v902, %v1014
    %v1060 = vsub.f32 %v907, %v1016
    %v1061 = vsub.f32 %v912, %v1018
    %v1062 = vsub.f32 %v917, %v1020
    %v1063 = vsub.f32 %v922, %v1022
    %v1064 = vsub.f32 %v927, %v1024
    %v1065 = vsub.f32 %v932, %v1026
    %v1066 = vsub.f32 %v937, %v1028
    %v1067 = vsub.f32 %v942, %v1030
    %v1068 = vsub.f32 %v947, %v1032
    %v1069 = vsub.f32 %v952, %v1034
    %v1070 = vsub.f32 %v957, %v1036
    %v1071 = vsub.f32 %v962, %v1038
    %v1072 = vsub.f32 %v967, %v1040
    %v1073 = vsub.f32 %v972, %v1042
    %v1074 = vsub.f32 %v977, %v1044
    %v1075 = vsub.f32 %v982, %v1046
    %v1076 = vsub.f32 %v987, %v1048
    %v1077 = vsub.f32 %v992, %v1050
    %v1078 = vsub.f32 %v997, %v1052
    %v1079 = vsub.f32 %v1002, %v1054
    %v1080 = vmul.f32 %v1055, 1.442695
    %v1081 = vpow.pop %v1080
    %v1082 = vmul.f32 %v1056, 1.442695
    %v1083 = vpow.pop %v1082
    %v1084 = vmul.f32 %v1057, 1.442695
    %v1085 = vpow.pop %v1084
    %v1086 = vmul.f32 %v1058, 1.442695
    %v1087 = vpow.pop %v1086
    %v1088 = vmul.f32 %v1059, 1.442695
    %v1089 = vpow.pop %v1088
    %v1090 = vmul.f32 %v1060, 1.442695
    %v1091 = vpow.pop %v1090
    %v1092 = vmul.f32 %v1061, 1.442695
    %v1093 = vpow.pop %v1092
    %v1094 = vmul.f32 %v1062, 1.442695
    %v1095 = vpow.pop %v1094
    %v1096 = vmul.f32 %v1063, 1.442695
    %v1097 = vpow.pop %v1096
    %v1098 = vmul.f32 %v1064, 1.442695
    %v1099 = vpow.pop %v1098
    %v1100 = vmul.f32 %v1065, 1.442695
    %v1101 = vpow.pop %v1100
    %v1102 = vmul.f32 %v1066, 1.442695
    %v1103 = vpow.pop %v1102
    %v1104 = vmul.f32 %v1067, 1.442695
    %v1105 = vpow.pop %v1104
    %v1106 = vmul.f32 %v1068, 1.442695
    %v1107 = vpow.pop %v1106
    %v1108 = vmul.f32 %v1069, 1.442695
    %v1109 = vpow.pop %v1108
    %v1110 = vmul.f32 %v1070, 1.442695
    %v1111 = vpow.pop %v1110
    %v1112 = vmul.f32 %v1071, 1.442695
    %v1113 = vpow.pop %v1112
    %v1114 = vmul.f32 %v1072, 1.442695
    %v1115 = vpow.pop %v1114
    %v1116 = vmul.f32 %v1073, 1.442695
    %v1117 = vpow.pop %v1116
    %v1118 = vmul.f32 %v1074, 1.442695
    %v1119 = vpow.pop %v1118
    %v1120 = vmul.f32 %v1075, 1.442695
    %v1121 = vpow.pop %v1120
    %v1122 = vmul.f32 %v1076, 1.442695
    %v1123 = vpow.pop %v1122
    %v1124 = vmul.f32 %v1077, 1.442695
    %v1125 = vpow.pop %v1124
    %v1126 = vmul.f32 %v1078, 1.442695
    %v1127 = vpow.pop %v1126
    %v1128 = vmul.f32 %v1079, 1.442695
    %v1129 = vpow.pop %v1128
    %1130 = vadd.xlane.f32.xlu0 %v1081
    %v1131 = vpop.xlane.xlu0 %1130
    %1132 = vadd.xlane.f32.xlu0 %v1083
    %v1133 = vpop.xlane.xlu0 %1132
    %1134 = vadd.xlane.f32.xlu0 %v1085
    %v1135 = vpop.xlane.xlu0 %1134
    %1136 = vadd.xlane.f32.xlu0 %v1087
    %v1137 = vpop.xlane.xlu0 %1136
    %1138 = vadd.xlane.f32.xlu0 %v1089
    %v1139 = vpop.xlane.xlu0 %1138
    %1140 = vadd.xlane.f32.xlu0 %v1091
    %v1141 = vpop.xlane.xlu0 %1140
    %1142 = vadd.xlane.f32.xlu0 %v1093
    %v1143 = vpop.xlane.xlu0 %1142
    %1144 = vadd.xlane.f32.xlu0 %v1095
    %v1145 = vpop.xlane.xlu0 %1144
    %1146 = vadd.xlane.f32.xlu0 %v1097
    %v1147 = vpop.xlane.xlu0 %1146
    %1148 = vadd.xlane.f32.xlu0 %v1099
    %v1149 = vpop.xlane.xlu0 %1148
    %1150 = vadd.xlane.f32.xlu0 %v1101
    %v1151 = vpop.xlane.xlu0 %1150
    %1152 = vadd.xlane.f32.xlu0 %v1103
    %v1153 = vpop.xlane.xlu0 %1152
    %1154 = vadd.xlane.f32.xlu0 %v1105
    %v1155 = vpop.xlane.xlu0 %1154
    %1156 = vadd.xlane.f32.xlu0 %v1107
    %v1157 = vpop.xlane.xlu0 %1156
    %1158 = vadd.xlane.f32.xlu0 %v1109
    %v1159 = vpop.xlane.xlu0 %1158
    %1160 = vadd.xlane.f32.xlu0 %v1111
    %v1161 = vpop.xlane.xlu0 %1160
    %1162 = vadd.xlane.f32.xlu0 %v1113
    %v1163 = vpop.xlane.xlu0 %1162
    %1164 = vadd.xlane.f32.xlu0 %v1115
    %v1165 = vpop.xlane.xlu0 %1164
    %1166 = vadd.xlane.f32.xlu0 %v1117
    %v1167 = vpop.xlane.xlu0 %1166
    %1168 = vadd.xlane.f32.xlu0 %v1119
    %v1169 = vpop.xlane.xlu0 %1168
    %1170 = vadd.xlane.f32.xlu0 %v1121
    %v1171 = vpop.xlane.xlu0 %1170
    %1172 = vadd.xlane.f32.xlu0 %v1123
    %v1173 = vpop.xlane.xlu0 %1172
    %1174 = vadd.xlane.f32.xlu0 %v1125
    %v1175 = vpop.xlane.xlu0 %1174
    %1176 = vadd.xlane.f32.xlu0 %v1127
    %v1177 = vpop.xlane.xlu0 %1176
    %1178 = vadd.xlane.f32.xlu0 %v1129
    %v1179 = vpop.xlane.xlu0 %1178
    %v1180 = vrcp.pop %v1131
    %v1181 = vmul.f32 %v1081, %v1180
    %v1182 = vrcp.pop %v1133
    %v1183 = vmul.f32 %v1083, %v1182
    %v1184 = vrcp.pop %v1135
    %v1185 = vmul.f32 %v1085, %v1184
    %v1186 = vrcp.pop %v1137
    %v1187 = vmul.f32 %v1087, %v1186
    %v1188 = vrcp.pop %v1139
    %v1189 = vmul.f32 %v1089, %v1188
    %v1190 = vrcp.pop %v1141
    %v1191 = vmul.f32 %v1091, %v1190
    %v1192 = vrcp.pop %v1143
    %v1193 = vmul.f32 %v1093, %v1192
    %v1194 = vrcp.pop %v1145
    %v1195 = vmul.f32 %v1095, %v1194
    %v1196 = vrcp.pop %v1147
    %v1197 = vmul.f32 %v1097, %v1196
    %v1198 = vrcp.pop %v1149
    %v1199 = vmul.f32 %v1099, %v1198
    %v1200 = vrcp.pop %v1151
    %v1201 = vmul.f32 %v1101, %v1200
    %v1202 = vrcp.pop %v1153
    %v1203 = vmul.f32 %v1103, %v1202
    %v1204 = vrcp.pop %v1155
    %v1205 = vmul.f32 %v1105, %v1204
    %v1206 = vrcp.pop %v1157
    %v1207 = vmul.f32 %v1107, %v1206
    %v1208 = vrcp.pop %v1159
    %v1209 = vmul.f32 %v1109, %v1208
    %v1210 = vrcp.pop %v1161
    %v1211 = vmul.f32 %v1111, %v1210
    %v1212 = vrcp.pop %v1163
    %v1213 = vmul.f32 %v1113, %v1212
    %v1214 = vrcp.pop %v1165
    %v1215 = vmul.f32 %v1115, %v1214
    %v1216 = vrcp.pop %v1167
    %v1217 = vmul.f32 %v1117, %v1216
    %v1218 = vrcp.pop %v1169
    %v1219 = vmul.f32 %v1119, %v1218
    %v1220 = vrcp.pop %v1171
    %v1221 = vmul.f32 %v1121, %v1220
    %v1222 = vrcp.pop %v1173
    %v1223 = vmul.f32 %v1123, %v1222
    %v1224 = vrcp.pop %v1175
    %v1225 = vmul.f32 %v1125, %v1224
    %v1226 = vrcp.pop %v1177
    %v1227 = vmul.f32 %v1127, %v1226
    %v1228 = vrcp.pop %v1179
    %v1229 = vmul.f32 %v1129, %v1228
    %1230 = vst [vmem:[#allocation7] sm:$0xff] %v1181
    %1231 = vst [vmem:[#allocation7 + $0x8] sm:$0xff] %v1183
    %1232 = vst [vmem:[#allocation7 + $0x10] sm:$0xff] %v1185
    %1233 = vst [vmem:[#allocation7 + $0x18] sm:$0xff] %v1187
    %1234 = vst [vmem:[#allocation7 + $0x20] sm:$0xff] %v1189
    %1235 = vst [vmem:[#allocation7 + $0x28] sm:$0xff] %v1191
    %1236 = vst [vmem:[#allocation7 + $0x30] sm:$0xff] %v1193
    %1237 = vst [vmem:[#allocation7 + $0x38] sm:$0xff] %v1195
    %1238 = vst [vmem:[#allocation7 + $0x40] sm:$0xff] %v1197
    %1239 = vst [vmem:[#allocation7 + $0x48] sm:$0xff] %v1199
    %1240 = vst [vmem:[#allocation7 + $0x50] sm:$0xff] %v1201
    %1241 = vst [vmem:[#allocation7 + $0x58] sm:$0xff] %v1203
    %1242 = vst [vmem:[#allocation7 + $0x60] sm:$0xff] %v1205
    %1243 = vst [vmem:[#allocation7 + $0x68] sm:$0xff] %v1207
    %1244 = vst [vmem:[#allocation7 + $0x70] sm:$0xff] %v1209
    %1245 = vst [vmem:[#allocation7 + $0x78] sm:$0xff] %v1211
    %1246 = vst [vmem:[#allocation7 + $0x80] sm:$0xff] %v1213
    %1247 = vst [vmem:[#allocation7 + $0x88] sm:$0xff] %v1215
    %1248 = vst [vmem:[#allocation7 + $0x90] sm:$0xff] %v1217
    %1249 = vst [vmem:[#allocation7 + $0x98] sm:$0xff] %v1219
    %1250 = vst [vmem:[#allocation7 + $0xa0] sm:$0xff] %v1221
    %1251 = vst [vmem:[#allocation7 + $0xa8] sm:$0xff] %v1223
    %1252 = vst [vmem:[#allocation7 + $0xb0] sm:$0xff] %v1225
    %1253 = vst [vmem:[#allocation7 + $0xb8] sm:$0xff] %v1227
    %1254 = vst [vmem:[#allocation7 + $0xc0] sm:$0xff] %v1229
    // Predicated region
    $region38: #{tpu_custom_call.1} parent=1 // pred_check
      _
    $region39: #{tpu_custom_call.1} parent=1 // pred_check_branch
      %1256 = sbr.rel (0) target = $region41
    $region40: #{tpu_custom_call.1} parent=1 // pred_region
      %s1258 = ssub.s32 3200, 3200
      %1259 = vsyncadd [#allocation4], %s1258
      %s1260 = sshll.u32 [#allocation7], 4
      %s1261 = int_to_ptr.vmem [resolvable:$true] %s1260
      %1266 = dma.vmem_to_hbm [thread:$0]  %s1261, 3200, %s7, [#allocation4], 128, 128, 8
    $region41: #{tpu_custom_call.1} parent=1 // pred_fallthru
      _
    // Predicated region
    $region42: #{tpu_custom_call.1} parent=1 // pred_check
      _
    $region43: #{tpu_custom_call.1} parent=1 // pred_check_branch
      %1268 = sbr.rel (0) target = $region45
    $region44: #{tpu_custom_call.1} parent=1 // pred_region
      %1269 = dma.done [#allocation4], 3200
    $region45: #{tpu_custom_call.1} parent=1 // pred_fallthru
      _
    %1270 = vsyncpa [#allocation3], 1
    %1271 = vsyncpa [#allocation6], 1
    %1272 = vsyncpa [#allocation4], 1

</llo_original>
